<compile_context>
chip_gen: v5e
topology: v5e:2x2
jax: 0.10.0
libtpu: 0.0.40
codegen_flags: <defaults>
</compile_context>

<pallas_src>
import jax
import jax.numpy as jnp
from jax import lax
from jax.experimental import pallas as pl
from jax.experimental.pallas import tpu as pltpu


# ----------------------------- Pallas kernel ------------------------------- #
def _cawa_kernel(att_sc_ref, xkq_ref, patches_ref, w_ds_ref, ds_shift_ref, out_ref):
    att_sc = att_sc_ref[...]                                        # (C, 1) f32

    # --- softmax over the 4 quadrants: pass 1 -> max & denominator ---
    l0 = att_sc * xkq_ref[0].astype(jnp.float32)
    l1 = att_sc * xkq_ref[1].astype(jnp.float32)
    l2 = att_sc * xkq_ref[2].astype(jnp.float32)
    l3 = att_sc * xkq_ref[3].astype(jnp.float32)
    mx = jnp.maximum(jnp.maximum(l0, l1), jnp.maximum(l2, l3))      # (C, T)
    denom = (jnp.exp(l0 - mx) + jnp.exp(l1 - mx)
             + jnp.exp(l2 - mx) + jnp.exp(l3 - mx))
    inv_denom = pl.reciprocal(denom, approx=True)                   # EUP slot (cheap)

    # --- grouped 3x3/s2 conv (BN scale folded into weights) + shift + ReLU,
    #     recompute the quadrant prob and combine immediately (small live set) ---
    acc = jnp.zeros(out_ref.shape, jnp.float32)
    for m in range(4):
        om = jnp.dot(w_ds_ref[m], patches_ref[m],
                     preferred_element_type=jnp.float32)            # bf16 MXU, f32 acc
        om = jnp.maximum(om + ds_shift_ref[m], 0.0)                 # folded-BN shift + ReLU
        p = jnp.exp(att_sc * xkq_ref[m].astype(jnp.float32) - mx) * inv_denom
        acc = acc + om * p                                          # torch.sum(x * att, -1)
    out_ref[...] = acc


# ------------------------------ host wrapper ------------------------------- #
def _round_up(v, m):
    return (v + m - 1) // m * m


def cawa_conv_forward(x, params):
    B, C, H, W = x.shape
    assert C % 4 == 0, "grouped conv requires C % 4 == 0"
    pad_h, pad_w = H % 2, W % 2
    Hp, Wp = H + pad_h, W + pad_w
    Ho, Wo = Hp // 2, Wp // 2
    HW = Ho * Wo
    K = (C // 4) * 9
    K_pad = _round_up(K, 8)                  # sublane-dense contraction dim
    HW_pad = _round_up(HW, 128)              # lane-dense spatial dim
    eps = 1e-5

    # --- attention branch hoisted to host (N=1 matmul is useless on the MXU) ---
    xk = jnp.pad(x, ((0, 0), (0, 0), (0, pad_h), (0, pad_w)))
    pooled = jnp.mean(xk, axis=(2, 3))                              # (B, C)
    y = pooled @ params['w_att'].T + params['b_att']
    a1 = params['bn1_gamma'] / jnp.sqrt(params['bn1_var'] + eps)
    att_sc = a1 * (y - params['bn1_mean']) + params['bn1_beta']     # (B, C)
    att_sc = att_sc.reshape(B, C, 1).astype(jnp.float32)

    # --- fold ds_conv BN scale into the weights; keep only the shift ---
    a2 = params['bn2_gamma'] / jnp.sqrt(params['bn2_var'] + eps)
    b2 = params['bn2_beta'] - a2 * params['bn2_mean']
    w_ds = params['w_ds'].reshape(4, C, K) * a2.reshape(4, C, 1)
    w_ds = jnp.pad(w_ds, ((0, 0), (0, 0), (0, K_pad - K))).astype(jnp.bfloat16)
    ds_shift = b2.reshape(4, C, 1).astype(jnp.float32)

    # --- glue: quadrant split 'B C (m H) (n W) -> (m n) C (H W)'  (bf16 stream) ---
    xkq = (xk.reshape(B, C, 2, Ho, 2, Wo)
             .transpose(0, 2, 4, 1, 3, 5)
             .reshape(B, 4, C, HW))
    xkq = jnp.pad(xkq, ((0, 0), (0, 0), (0, 0),
                        (0, HW_pad - HW))).astype(jnp.bfloat16)

    # --- glue: im2col for the grouped 3x3 / stride-2 / pad-1 conv (bf16 stream) ---
    # TODO(synk): build the 9 taps in-kernel from a halo'd tile to avoid the 2.25x
    # host-side patch materialization.
    xc = jnp.pad(x, ((0, 0), (0, 0), (1, 1), (1, 1)))
    cols = [xc[:, :, ki:ki + 2 * Ho:2, kj:kj + 2 * Wo:2]            # each (B, C, Ho, Wo)
            for ki in range(3) for kj in range(3)]
    cols = jnp.stack(cols, axis=2)                                  # (B, C, 9, Ho, Wo)
    patches = cols.reshape(B, 4, K, HW)
    patches = jnp.pad(patches, ((0, 0), (0, 0), (0, K_pad - K),
                                (0, HW_pad - HW))).astype(jnp.bfloat16)

    # --- spatial tile choice: biggest lane-dense tile within a VMEM budget that is
    #     safe on v7x (64 MiB physical) and under default scoped limits elsewhere ---
    budget = 24 * 2 ** 20
    HW_T = 128
    for t in (2048, 1024, 512, 256, 128):
        if HW_pad % t == 0:
            per_step = 2 * ((4 * C + 4 * K_pad) * t * 2 + C * t * 4)
            if per_step <= budget:
                HW_T = t
                break
    n_tiles = HW_pad // HW_T

    stream_bytes = 2 * ((4 * C + 4 * K_pad) * HW_T * 2 + C * HW_T * 4)  # dbl-buffered I/O
    temp_bytes = 12 * C * HW_T * 4                                       # in-kernel f32 temps
    resident_bytes = 4 * C * K_pad * 2 + 8 * C * 4                       # weights / shifts
    vmem_limit = int(min(max(stream_bytes + temp_bytes + resident_bytes + (4 << 20),
                             16 << 20), 56 << 20))

    out = pl.pallas_call(
        _cawa_kernel,
        out_shape=jax.ShapeDtypeStruct((B, C, HW_pad), jnp.float32),
        grid=(B, n_tiles),
        in_specs=[
            pl.BlockSpec((None, C, 1), lambda b, t: (b, 0, 0)),              # att scale
            pl.BlockSpec((None, 4, C, HW_T), lambda b, t: (b, 0, 0, t)),     # quadrants
            pl.BlockSpec((None, 4, K_pad, HW_T), lambda b, t: (b, 0, 0, t)), # im2col taps
            pl.BlockSpec((4, C, K_pad), lambda b, t: (0, 0, 0)),             # folded weights
            pl.BlockSpec((4, C, 1), lambda b, t: (0, 0, 0)),                 # BN shift
        ],
        out_specs=pl.BlockSpec((None, C, HW_T), lambda b, t: (b, 0, t)),
        compiler_params=pltpu.CompilerParams(
            dimension_semantics=("parallel", "parallel"),
            vmem_limit_bytes=vmem_limit),
    )(att_sc, xkq, patches, w_ds, ds_shift)

    return out[:, :, :HW].reshape(B, C, Ho, Wo)


# --------------------------- pure-JAX reference ---------------------------- #
def reference_forward(x, p):
    B, C, H, W = x.shape
    eps = 1e-5
    pad_h, pad_w = H % 2, W % 2
    xk = jnp.pad(x, ((0, 0), (0, 0), (0, pad_h), (0, pad_w)))
    Hp, Wp = H + pad_h, W + pad_w
    Ho, Wo = Hp // 2, Wp // 2

    pooled = xk.mean(axis=(2, 3))                                   # (B, C)
    y = pooled @ p['w_att'].T + p['b_att']
    a1 = p['bn1_gamma'] / jnp.sqrt(p['bn1_var'] + eps)
    att_sc = a1 * (y - p['bn1_mean']) + p['bn1_beta']               # (B, C)

    attv = att_sc[:, :, None, None] * xk                            # (B, C, Hp, Wp)
    attq = (attv.reshape(B, C, 2, Ho, 2, Wo)
                .transpose(0, 1, 3, 5, 2, 4)
                .reshape(B, C, Ho, Wo, 4))
    attq = jax.nn.softmax(attq, axis=-1)

    y2 = lax.conv_general_dilated(
        x, p['w_ds'], window_strides=(2, 2), padding=((1, 1), (1, 1)),
        dimension_numbers=('NCHW', 'OIHW', 'NCHW'), feature_group_count=4)
    a2 = p['bn2_gamma'] / jnp.sqrt(p['bn2_var'] + eps)
    y2 = a2[None, :, None, None] * (y2 - p['bn2_mean'][None, :, None, None]) \
        + p['bn2_beta'][None, :, None, None]
    y2 = jnp.maximum(y2, 0.0)
    y2 = y2.reshape(B, 4, C, Ho, Wo).transpose(0, 2, 3, 4, 1)       # (B, C, Ho, Wo, 4)
    return jnp.sum(y2 * attq, axis=-1)


# ------------------------------ init & main -------------------------------- #
def init_params(key, C):
    ks = jax.random.split(key, 11)
    p = {}
    p['w_att'] = 0.3 * jax.random.normal(ks[0], (C, C), jnp.float32)
    p['b_att'] = 0.1 * jax.random.normal(ks[1], (C,), jnp.float32)
    p['bn1_gamma'] = 1.0 + 0.1 * jax.random.normal(ks[2], (C,), jnp.float32)
    p['bn1_beta'] = 0.1 * jax.random.normal(ks[3], (C,), jnp.float32)
    p['bn1_mean'] = 0.1 * jax.random.normal(ks[4], (C,), jnp.float32)
    p['bn1_var'] = 0.5 + 0.5 * jnp.abs(jax.random.normal(ks[5], (C,), jnp.float32))
    p['w_ds'] = 0.2 * jax.random.normal(ks[6], (4 * C, C // 4, 3, 3), jnp.float32)
    p['bn2_gamma'] = 1.0 + 0.1 * jax.random.normal(ks[7], (4 * C,), jnp.float32)
    p['bn2_beta'] = 0.1 * jax.random.normal(ks[8], (4 * C,), jnp.float32)
    p['bn2_mean'] = 0.1 * jax.random.normal(ks[9], (4 * C,), jnp.float32)
    p['bn2_var'] = 0.5 + 0.5 * jnp.abs(jax.random.normal(ks[10], (4 * C,), jnp.float32))
    return p


if __name__ == "__main__":
    key = jax.random.PRNGKey(0)
    kx, kp = jax.random.split(key)
    B, C, H, W = 2, 8, 16, 16                # C must be divisible by 4 (groups=4)
    x = jax.random.normal(kx, (B, C, H, W), jnp.float32)
    params = init_params(kp, C)

    out = jax.block_until_ready(cawa_conv_forward(x, params))
    ref = jax.block_until_ready(reference_forward(x, params))
    assert out.shape == (B, C, H // 2, W // 2), out.shape
    max_err = float(jnp.max(jnp.abs(out - ref)))
    if max_err > 5e-2:
        raise AssertionError(f"mismatch vs reference: max abs err = {max_err}")
    print("KERNEL_OK")
</pallas_src>

<mosaic_0001>
module attributes {stable_mosaic.version = 11 : i64} {
  func.func @_cawa_kernel(%arg0: i32, %arg1: i32, %arg2: memref<1x8x1xf32, #tpu.memory_space<vmem>>, %arg3: memref<1x4x8x128xbf16, #tpu.memory_space<vmem>>, %arg4: memref<1x4x24x128xbf16, #tpu.memory_space<vmem>>, %arg5: memref<4x8x24xbf16, #tpu.memory_space<vmem>>, %arg6: memref<4x8x1xf32, #tpu.memory_space<vmem>>, %arg7: memref<1x8x128xf32, #tpu.memory_space<vmem>>) attributes {dimension_semantics = [#tpu.dimension_semantics<parallel>, #tpu.dimension_semantics<parallel>], iteration_bounds = array<i64: 2, 1>, scalar_prefetch = 0 : i64, scratch_operands = 0 : i64, tpu.core_type = #tpu.core_type<tc>, window_params = [{transform_indices = @transform_0, window_bounds = array<i64: 1, 8, 1>}, {transform_indices = @transform_1, window_bounds = array<i64: 1, 4, 8, 128>}, {transform_indices = @transform_2, window_bounds = array<i64: 1, 4, 24, 128>}, {pipeline_mode = #tpu.pipeline_mode<synchronous>, transform_indices = @transform_3, window_bounds = array<i64: 4, 8, 24>}, {pipeline_mode = #tpu.pipeline_mode<synchronous>, transform_indices = @transform_4, window_bounds = array<i64: 4, 8, 1>}, {transform_indices = @transform_5, window_bounds = array<i64: 1, 8, 128>}]} {
    %c0 = arith.constant 0 : index
    %c0_0 = arith.constant 0 : index
    %c0_1 = arith.constant 0 : index
    %0 = vector.load %arg2[%c0, %c0_0, %c0_1] : memref<1x8x1xf32, #tpu.memory_space<vmem>>, vector<1x8x1xf32>
    %1 = vector.shape_cast %0 : vector<1x8x1xf32> to vector<8x1xf32>
    %c0_2 = arith.constant 0 : index
    %c0_3 = arith.constant 0 : index
    %c0_4 = arith.constant 0 : index
    %c0_5 = arith.constant 0 : index
    %2 = vector.load %arg3[%c0_2, %c0_3, %c0_4, %c0_5] : memref<1x4x8x128xbf16, #tpu.memory_space<vmem>>, vector<1x1x8x128xbf16>
    %3 = vector.shape_cast %2 : vector<1x1x8x128xbf16> to vector<8x128xbf16>
    %4 = arith.extf %3 : vector<8x128xbf16> to vector<8x128xf32>
    %5 = vector.broadcast %1 : vector<8x1xf32> to vector<8x128xf32>
    %6 = arith.mulf %5, %4 : vector<8x128xf32>
    %c0_6 = arith.constant 0 : index
    %c1 = arith.constant 1 : index
    %c0_7 = arith.constant 0 : index
    %c0_8 = arith.constant 0 : index
    %7 = vector.load %arg3[%c0_6, %c1, %c0_7, %c0_8] : memref<1x4x8x128xbf16, #tpu.memory_space<vmem>>, vector<1x1x8x128xbf16>
    %8 = vector.shape_cast %7 : vector<1x1x8x128xbf16> to vector<8x128xbf16>
    %9 = arith.extf %8 : vector<8x128xbf16> to vector<8x128xf32>
    %10 = vector.broadcast %1 : vector<8x1xf32> to vector<8x128xf32>
    %11 = arith.mulf %10, %9 : vector<8x128xf32>
    %c0_9 = arith.constant 0 : index
    %c2 = arith.constant 2 : index
    %c0_10 = arith.constant 0 : index
    %c0_11 = arith.constant 0 : index
    %12 = vector.load %arg3[%c0_9, %c2, %c0_10, %c0_11] : memref<1x4x8x128xbf16, #tpu.memory_space<vmem>>, vector<1x1x8x128xbf16>
    %13 = vector.shape_cast %12 : vector<1x1x8x128xbf16> to vector<8x128xbf16>
    %14 = arith.extf %13 : vector<8x128xbf16> to vector<8x128xf32>
    %15 = vector.broadcast %1 : vector<8x1xf32> to vector<8x128xf32>
    %16 = arith.mulf %15, %14 : vector<8x128xf32>
    %c0_12 = arith.constant 0 : index
    %c3 = arith.constant 3 : index
    %c0_13 = arith.constant 0 : index
    %c0_14 = arith.constant 0 : index
    %17 = vector.load %arg3[%c0_12, %c3, %c0_13, %c0_14] : memref<1x4x8x128xbf16, #tpu.memory_space<vmem>>, vector<1x1x8x128xbf16>
    %18 = vector.shape_cast %17 : vector<1x1x8x128xbf16> to vector<8x128xbf16>
    %19 = arith.extf %18 : vector<8x128xbf16> to vector<8x128xf32>
    %20 = vector.broadcast %1 : vector<8x1xf32> to vector<8x128xf32>
    %21 = arith.mulf %20, %19 : vector<8x128xf32>
    %22 = arith.maximumf %6, %11 : vector<8x128xf32>
    %23 = arith.maximumf %16, %21 : vector<8x128xf32>
    %24 = arith.maximumf %22, %23 : vector<8x128xf32>
    %25 = arith.subf %6, %24 : vector<8x128xf32>
    %26 = math.exp %25 : vector<8x128xf32>
    %27 = arith.subf %11, %24 : vector<8x128xf32>
    %28 = math.exp %27 : vector<8x128xf32>
    %29 = arith.addf %26, %28 : vector<8x128xf32>
    %30 = arith.subf %16, %24 : vector<8x128xf32>
    %31 = math.exp %30 : vector<8x128xf32>
    %32 = arith.addf %29, %31 : vector<8x128xf32>
    %33 = arith.subf %21, %24 : vector<8x128xf32>
    %34 = math.exp %33 : vector<8x128xf32>
    %35 = arith.addf %32, %34 : vector<8x128xf32>
    %36 = tpu.reciprocal %35 {approx = true} : vector<8x128xf32> -> vector<8x128xf32>
    %cst = arith.constant 0.000000e+00 : f32
    %37 = vector.broadcast %cst : f32 to vector<8x128xf32>
    %c0_15 = arith.constant 0 : index
    %c0_16 = arith.constant 0 : index
    %c0_17 = arith.constant 0 : index
    %38 = vector.load %arg5[%c0_15, %c0_16, %c0_17] : memref<4x8x24xbf16, #tpu.memory_space<vmem>>, vector<1x8x24xbf16>
    %39 = vector.shape_cast %38 : vector<1x8x24xbf16> to vector<8x24xbf16>
    %c0_18 = arith.constant 0 : index
    %c0_19 = arith.constant 0 : index
    %c0_20 = arith.constant 0 : index
    %c0_21 = arith.constant 0 : index
    %40 = vector.load %arg4[%c0_18, %c0_19, %c0_20, %c0_21] : memref<1x4x24x128xbf16, #tpu.memory_space<vmem>>, vector<1x1x24x128xbf16>
    %41 = vector.shape_cast %40 : vector<1x1x24x128xbf16> to vector<24x128xbf16>
    %cst_22 = arith.constant dense<0.000000e+00> : vector<8x128xf32>
    %42 = tpu.matmul %39, %41, %cst_22 {dimension_numbers = #tpu.dot_dimension_numbers<[1], [0], [0], [1], [0, 0, 1, 1], [], []>} : vector<8x24xbf16>, vector<24x128xbf16>, vector<8x128xf32> -> vector<8x128xf32>
    %c0_23 = arith.constant 0 : index
    %c0_24 = arith.constant 0 : index
    %c0_25 = arith.constant 0 : index
    %43 = vector.load %arg6[%c0_23, %c0_24, %c0_25] : memref<4x8x1xf32, #tpu.memory_space<vmem>>, vector<1x8x1xf32>
    %44 = vector.shape_cast %43 : vector<1x8x1xf32> to vector<8x1xf32>
    %45 = vector.broadcast %44 : vector<8x1xf32> to vector<8x128xf32>
    %46 = arith.addf %42, %45 : vector<8x128xf32>
    %cst_26 = arith.constant 0.000000e+00 : f32
    %47 = vector.broadcast %cst_26 : f32 to vector<8x128xf32>
    %48 = arith.maximumf %46, %47 : vector<8x128xf32>
    %c0_27 = arith.constant 0 : index
    %c0_28 = arith.constant 0 : index
    %c0_29 = arith.constant 0 : index
    %c0_30 = arith.constant 0 : index
    %49 = vector.load %arg3[%c0_27, %c0_28, %c0_29, %c0_30] : memref<1x4x8x128xbf16, #tpu.memory_space<vmem>>, vector<1x1x8x128xbf16>
    %50 = vector.shape_cast %49 : vector<1x1x8x128xbf16> to vector<8x128xbf16>
    %51 = arith.extf %50 : vector<8x128xbf16> to vector<8x128xf32>
    %52 = vector.broadcast %1 : vector<8x1xf32> to vector<8x128xf32>
    %53 = arith.mulf %52, %51 : vector<8x128xf32>
    %54 = arith.subf %53, %24 : vector<8x128xf32>
    %55 = math.exp %54 : vector<8x128xf32>
    %56 = arith.mulf %55, %36 : vector<8x128xf32>
    %57 = arith.mulf %48, %56 : vector<8x128xf32>
    %58 = arith.addf %37, %57 : vector<8x128xf32>
    %c1_31 = arith.constant 1 : index
    %c0_32 = arith.constant 0 : index
    %c0_33 = arith.constant 0 : index
    %59 = vector.load %arg5[%c1_31, %c0_32, %c0_33] : memref<4x8x24xbf16, #tpu.memory_space<vmem>>, vector<1x8x24xbf16>
    %60 = vector.shape_cast %59 : vector<1x8x24xbf16> to vector<8x24xbf16>
    %c0_34 = arith.constant 0 : index
    %c1_35 = arith.constant 1 : index
    %c0_36 = arith.constant 0 : index
    %c0_37 = arith.constant 0 : index
    %61 = vector.load %arg4[%c0_34, %c1_35, %c0_36, %c0_37] : memref<1x4x24x128xbf16, #tpu.memory_space<vmem>>, vector<1x1x24x128xbf16>
    %62 = vector.shape_cast %61 : vector<1x1x24x128xbf16> to vector<24x128xbf16>
    %cst_38 = arith.constant dense<0.000000e+00> : vector<8x128xf32>
    %63 = tpu.matmul %60, %62, %cst_38 {dimension_numbers = #tpu.dot_dimension_numbers<[1], [0], [0], [1], [0, 0, 1, 1], [], []>} : vector<8x24xbf16>, vector<24x128xbf16>, vector<8x128xf32> -> vector<8x128xf32>
    %c1_39 = arith.constant 1 : index
    %c0_40 = arith.constant 0 : index
    %c0_41 = arith.constant 0 : index
    %64 = vector.load %arg6[%c1_39, %c0_40, %c0_41] : memref<4x8x1xf32, #tpu.memory_space<vmem>>, vector<1x8x1xf32>
    %65 = vector.shape_cast %64 : vector<1x8x1xf32> to vector<8x1xf32>
    %66 = vector.broadcast %65 : vector<8x1xf32> to vector<8x128xf32>
    %67 = arith.addf %63, %66 : vector<8x128xf32>
    %cst_42 = arith.constant 0.000000e+00 : f32
    %68 = vector.broadcast %cst_42 : f32 to vector<8x128xf32>
    %69 = arith.maximumf %67, %68 : vector<8x128xf32>
    %c0_43 = arith.constant 0 : index
    %c1_44 = arith.constant 1 : index
    %c0_45 = arith.constant 0 : index
    %c0_46 = arith.constant 0 : index
    %70 = vector.load %arg3[%c0_43, %c1_44, %c0_45, %c0_46] : memref<1x4x8x128xbf16, #tpu.memory_space<vmem>>, vector<1x1x8x128xbf16>
    %71 = vector.shape_cast %70 : vector<1x1x8x128xbf16> to vector<8x128xbf16>
    %72 = arith.extf %71 : vector<8x128xbf16> to vector<8x128xf32>
    %73 = vector.broadcast %1 : vector<8x1xf32> to vector<8x128xf32>
    %74 = arith.mulf %73, %72 : vector<8x128xf32>
    %75 = arith.subf %74, %24 : vector<8x128xf32>
    %76 = math.exp %75 : vector<8x128xf32>
    %77 = arith.mulf %76, %36 : vector<8x128xf32>
    %78 = arith.mulf %69, %77 : vector<8x128xf32>
    %79 = arith.addf %58, %78 : vector<8x128xf32>
    %c2_47 = arith.constant 2 : index
    %c0_48 = arith.constant 0 : index
    %c0_49 = arith.constant 0 : index
    %80 = vector.load %arg5[%c2_47, %c0_48, %c0_49] : memref<4x8x24xbf16, #tpu.memory_space<vmem>>, vector<1x8x24xbf16>
    %81 = vector.shape_cast %80 : vector<1x8x24xbf16> to vector<8x24xbf16>
    %c0_50 = arith.constant 0 : index
    %c2_51 = arith.constant 2 : index
    %c0_52 = arith.constant 0 : index
    %c0_53 = arith.constant 0 : index
    %82 = vector.load %arg4[%c0_50, %c2_51, %c0_52, %c0_53] : memref<1x4x24x128xbf16, #tpu.memory_space<vmem>>, vector<1x1x24x128xbf16>
    %83 = vector.shape_cast %82 : vector<1x1x24x128xbf16> to vector<24x128xbf16>
    %cst_54 = arith.constant dense<0.000000e+00> : vector<8x128xf32>
    %84 = tpu.matmul %81, %83, %cst_54 {dimension_numbers = #tpu.dot_dimension_numbers<[1], [0], [0], [1], [0, 0, 1, 1], [], []>} : vector<8x24xbf16>, vector<24x128xbf16>, vector<8x128xf32> -> vector<8x128xf32>
    %c2_55 = arith.constant 2 : index
    %c0_56 = arith.constant 0 : index
    %c0_57 = arith.constant 0 : index
    %85 = vector.load %arg6[%c2_55, %c0_56, %c0_57] : memref<4x8x1xf32, #tpu.memory_space<vmem>>, vector<1x8x1xf32>
    %86 = vector.shape_cast %85 : vector<1x8x1xf32> to vector<8x1xf32>
    %87 = vector.broadcast %86 : vector<8x1xf32> to vector<8x128xf32>
    %88 = arith.addf %84, %87 : vector<8x128xf32>
    %cst_58 = arith.constant 0.000000e+00 : f32
    %89 = vector.broadcast %cst_58 : f32 to vector<8x128xf32>
    %90 = arith.maximumf %88, %89 : vector<8x128xf32>
    %c0_59 = arith.constant 0 : index
    %c2_60 = arith.constant 2 : index
    %c0_61 = arith.constant 0 : index
    %c0_62 = arith.constant 0 : index
    %91 = vector.load %arg3[%c0_59, %c2_60, %c0_61, %c0_62] : memref<1x4x8x128xbf16, #tpu.memory_space<vmem>>, vector<1x1x8x128xbf16>
    %92 = vector.shape_cast %91 : vector<1x1x8x128xbf16> to vector<8x128xbf16>
    %93 = arith.extf %92 : vector<8x128xbf16> to vector<8x128xf32>
    %94 = vector.broadcast %1 : vector<8x1xf32> to vector<8x128xf32>
    %95 = arith.mulf %94, %93 : vector<8x128xf32>
    %96 = arith.subf %95, %24 : vector<8x128xf32>
    %97 = math.exp %96 : vector<8x128xf32>
    %98 = arith.mulf %97, %36 : vector<8x128xf32>
    %99 = arith.mulf %90, %98 : vector<8x128xf32>
    %100 = arith.addf %79, %99 : vector<8x128xf32>
    %c3_63 = arith.constant 3 : index
    %c0_64 = arith.constant 0 : index
    %c0_65 = arith.constant 0 : index
    %101 = vector.load %arg5[%c3_63, %c0_64, %c0_65] : memref<4x8x24xbf16, #tpu.memory_space<vmem>>, vector<1x8x24xbf16>
    %102 = vector.shape_cast %101 : vector<1x8x24xbf16> to vector<8x24xbf16>
    %c0_66 = arith.constant 0 : index
    %c3_67 = arith.constant 3 : index
    %c0_68 = arith.constant 0 : index
    %c0_69 = arith.constant 0 : index
    %103 = vector.load %arg4[%c0_66, %c3_67, %c0_68, %c0_69] : memref<1x4x24x128xbf16, #tpu.memory_space<vmem>>, vector<1x1x24x128xbf16>
    %104 = vector.shape_cast %103 : vector<1x1x24x128xbf16> to vector<24x128xbf16>
    %cst_70 = arith.constant dense<0.000000e+00> : vector<8x128xf32>
    %105 = tpu.matmul %102, %104, %cst_70 {dimension_numbers = #tpu.dot_dimension_numbers<[1], [0], [0], [1], [0, 0, 1, 1], [], []>} : vector<8x24xbf16>, vector<24x128xbf16>, vector<8x128xf32> -> vector<8x128xf32>
    %c3_71 = arith.constant 3 : index
    %c0_72 = arith.constant 0 : index
    %c0_73 = arith.constant 0 : index
    %106 = vector.load %arg6[%c3_71, %c0_72, %c0_73] : memref<4x8x1xf32, #tpu.memory_space<vmem>>, vector<1x8x1xf32>
    %107 = vector.shape_cast %106 : vector<1x8x1xf32> to vector<8x1xf32>
    %108 = vector.broadcast %107 : vector<8x1xf32> to vector<8x128xf32>
    %109 = arith.addf %105, %108 : vector<8x128xf32>
    %cst_74 = arith.constant 0.000000e+00 : f32
    %110 = vector.broadcast %cst_74 : f32 to vector<8x128xf32>
    %111 = arith.maximumf %109, %110 : vector<8x128xf32>
    %c0_75 = arith.constant 0 : index
    %c3_76 = arith.constant 3 : index
    %c0_77 = arith.constant 0 : index
    %c0_78 = arith.constant 0 : index
    %112 = vector.load %arg3[%c0_75, %c3_76, %c0_77, %c0_78] : memref<1x4x8x128xbf16, #tpu.memory_space<vmem>>, vector<1x1x8x128xbf16>
    %113 = vector.shape_cast %112 : vector<1x1x8x128xbf16> to vector<8x128xbf16>
    %114 = arith.extf %113 : vector<8x128xbf16> to vector<8x128xf32>
    %115 = vector.broadcast %1 : vector<8x1xf32> to vector<8x128xf32>
    %116 = arith.mulf %115, %114 : vector<8x128xf32>
    %117 = arith.subf %116, %24 : vector<8x128xf32>
    %118 = math.exp %117 : vector<8x128xf32>
    %119 = arith.mulf %118, %36 : vector<8x128xf32>
    %120 = arith.mulf %111, %119 : vector<8x128xf32>
    %121 = arith.addf %100, %120 : vector<8x128xf32>
    %c0_79 = arith.constant 0 : index
    %c0_80 = arith.constant 0 : index
    %c0_81 = arith.constant 0 : index
    %122 = vector.load %arg7[%c0_79, %c0_80, %c0_81] : memref<1x8x128xf32, #tpu.memory_space<vmem>>, vector<1x8x128xf32>
    %123 = vector.shape_cast %122 : vector<1x8x128xf32> to vector<8x128xf32>
    %124 = vector.shape_cast %121 : vector<8x128xf32> to vector<1x8x128xf32>
    tpu.vector_store %arg7[%c0_79, %c0_80, %c0_81], %124 {strides = array<i32>} : memref<1x8x128xf32, #tpu.memory_space<vmem>>, vector<1x8x128xf32>,
    return
  }
  func.func @transform_0(%arg0: i32, %arg1: i32) -> (i32, i32, i32) {
    %c0_i32 = arith.constant 0 : i32
    %c0_i32_0 = arith.constant 0 : i32
    %c0_i32_1 = arith.constant 0 : i32
    return %arg0, %c0_i32, %c0_i32_0 : i32, i32, i32
  }
  func.func @transform_1(%arg0: i32, %arg1: i32) -> (i32, i32, i32, i32) {
    %c0_i32 = arith.constant 0 : i32
    %c0_i32_0 = arith.constant 0 : i32
    %c0_i32_1 = arith.constant 0 : i32
    return %arg0, %c0_i32, %c0_i32_0, %arg1 : i32, i32, i32, i32
  }
  func.func @transform_2(%arg0: i32, %arg1: i32) -> (i32, i32, i32, i32) {
    %c0_i32 = arith.constant 0 : i32
    %c0_i32_0 = arith.constant 0 : i32
    %c0_i32_1 = arith.constant 0 : i32
    return %arg0, %c0_i32, %c0_i32_0, %arg1 : i32, i32, i32, i32
  }
  func.func @transform_3(%arg0: i32, %arg1: i32) -> (i32, i32, i32) {
    %c0_i32 = arith.constant 0 : i32
    %c0_i32_0 = arith.constant 0 : i32
    %c0_i32_1 = arith.constant 0 : i32
    %c0_i32_2 = arith.constant 0 : i32
    return %c0_i32, %c0_i32_0, %c0_i32_1 : i32, i32, i32
  }
  func.func @transform_4(%arg0: i32, %arg1: i32) -> (i32, i32, i32) {
    %c0_i32 = arith.constant 0 : i32
    %c0_i32_0 = arith.constant 0 : i32
    %c0_i32_1 = arith.constant 0 : i32
    %c0_i32_2 = arith.constant 0 : i32
    return %c0_i32, %c0_i32_0, %c0_i32_1 : i32, i32, i32
  }
  func.func @transform_5(%arg0: i32, %arg1: i32) -> (i32, i32, i32) {
    %c0_i32 = arith.constant 0 : i32
    %c0_i32_0 = arith.constant 0 : i32
    return %arg0, %c0_i32, %arg1 : i32, i32, i32
  }
}

</mosaic_0001>

<llo_original>
// kernel: tpu_custom_call.1
$region0: #{tpu_custom_call.1}
  #allocation0 [shape = 'u32[]', space=smem, size = 0x4, offset = 0x4, fixed_abs, tag = 'smem constant byte address 0x4 - core index']
  #allocation1 [shape = 'u32[72,128]{1,0:T(1,128)}', space=vmem, size = 0x9000, scoped, tag = 'internal scratch']
  %s0 = inlined_call_operand.vmem [shape: f32[2,8,1], index: 0, kind: input, shape index: {}]
  %s1 = inlined_call_operand.vmem [shape: bf16[2,4,8,128], index: 1, kind: input, shape index: {}]
  %s2 = inlined_call_operand.hbm [shape: bf16[2,4,24,128], index: 2, kind: input, shape index: {}]
  %s3 = inlined_call_operand.vmem [shape: bf16[4,8,24], index: 3, kind: input, shape index: {}]
  %s4 = inlined_call_operand.vmem [shape: f32[4,8,1], index: 4, kind: input, shape index: {}]
  %s5 = inlined_call_operand.hbm [shape: f32[2,8,128], index: 5, kind: output, shape index: {}]
  %s6 = sld [smem:[#allocation0]]
  $region57: #{tpu_custom_call.1} parent=0
    _
  %s8 = ssub.s32 1, %s6
  %s9 = scalar_select 0, %s8, %s6
  $region1: #{tpu_custom_call.1} parent=0
    #allocation2 [shape = 'u8[49152]{0}', space=vmem, size = 0xc000, scoped, tag = 'input window, operand 2']
    #allocation3 [shape = 's32[2]{0}', space=sflag, size = 0x8, scoped, tag = 'scoped memory for tpu_custom_call.1']
    #allocation4 [shape = 's32[2]{0}', space=sflag, size = 0x8, scoped, tag = 'scoped memory for tpu_custom_call.1']
    #allocation5 [shape = 'u8[8192]{0}', space=vmem, size = 0x2000, scoped, tag = 'output window, operand 0']
    %10 = vsyncpa [#allocation3], 0
    %s11 = scalar_lea.sflag [#allocation3], 1
    %12 = vsyncpa %s11, 0
    %13 = vsyncpa [#allocation4], 0
    %s14 = scalar_lea.sflag [#allocation4], 1
    %15 = vsyncpa %s14, 0
    loop: start=0, step=1, limit=4
    $region2: #{tpu_custom_call.1} parent=1 // loop_pre_header
      _
    $region3: #{tpu_custom_call.1} parent=1 // loop_header
      %s17 = sphi 0, %s21
      %p18 = scmp.ge.s32.totalorder %s17, 4
      %s24 = sphi 0, %s36
      %s25 = sphi 0, %s32
      %s26 = sphi 0, %s24
      %s27 = sphi 0, %s25
      %s28 = sphi 0, %s26
      %s29 = sphi 0, %s27
      %s39 = sphi 0, %s41
      %s42 = sphi 0, %s39
      %s43 = sphi 0, %s42
      %s59 = sphi 0, %s43
      %s67 = sphi 0, %s69
      %s70 = sphi 0, %s67
      %s71 = sphi 0, %s70
      %s87 = sphi 0, %s71
      %s95 = sphi 0, %s97
      %s98 = sphi 0, %s95
      %s99 = sphi 0, %s98
      %s115 = sphi 0, %s99
      %s119 = sphi 0, %s119
      %s121 = sphi 0, %s119
      %s122 = sphi 0, %s121
      %s136 = sphi 0, %s122
      %s140 = sphi 0, %s140
      %s142 = sphi 0, %s140
      %s143 = sphi 0, %s142
      %s157 = sphi 0, %s143
      %s165 = sphi 0, %s167
      %s168 = sphi 0, %s165
      %s169 = sphi 0, %s168
      %s185 = sphi 0, %s169
    $region4: #{tpu_custom_call.1} parent=1 // loop_header_branch
      %20 = sbr.rel (%p18) target = $region8
    $region5: #{tpu_custom_call.1} parent=1 // loop_body
      %s22 = ssub.s32 %s17, 1
      %s23 = ssub.s32 %s17, 2
      %s30 = sadd.s32 1, %s25
      %p31 = scmp.ge.s32.totalorder %s30, 1
      %s32 = scalar_select %p31, 0, %s30
      %s33 = sadd.s32 1, %s24
      %s34 = scalar_select %p31, %s33, %s24
      %p35 = scmp.ge.s32.totalorder %s34, 2
      %s36 = scalar_select %p35, 0, %s34
      %s37 = ssub.s32 %s24, %s36
      %p38 = scmp.eq.s32.totalorder %s37, 0
      %s40 = sadd.s32 %s39, 1
      %s41 = scalar_select %p38, %s39, %s40
      %p44 = pneg %p38
      %p45 = scmp.eq.s32.totalorder %s17, 1
      %p46 = por %p44, %p45
      %p47 = scmp.ne.s32.totalorder %s39, %s42
      %p48 = scmp.eq.s32.totalorder %s17, 0
      %p49 = por %p47, %p48
      %p50 = scmp.ne.s32.totalorder %s39, %s42
      %p51 = scmp.eq.s32.totalorder %s22, 1
      %p52 = por %p50, %p51
      %p53 = scmp.ne.s32.totalorder %s42, %s43
      %p54 = scmp.eq.s32.totalorder %s22, 0
      %p55 = por %p53, %p54
      %p56 = scmp.ne.s32.totalorder %s42, %s43
      %p57 = scmp.eq.s32.totalorder %s23, 1
      %p58 = por %p56, %p57
      %p60 = scmp.ne.s32.totalorder %s43, %s59
      %p61 = scmp.eq.s32.totalorder %s23, 0
      %p62 = por %p60, %p61
      %s63 = ssub.s32 %s24, %s36
      %s64 = ssub.s32 %s25, %s32
      %s65 = sor.u32 %s63, %s64
      %p66 = scmp.eq.s32.totalorder %s65, 0
      %s68 = sadd.s32 %s67, 1
      %s69 = scalar_select %p66, %s67, %s68
      %p72 = pneg %p66
      %p73 = scmp.eq.s32.totalorder %s17, 1
      %p74 = por %p72, %p73
      %p75 = scmp.ne.s32.totalorder %s67, %s70
      %p76 = scmp.eq.s32.totalorder %s17, 0
      %p77 = por %p75, %p76
      %p78 = scmp.ne.s32.totalorder %s67, %s70
      %p79 = scmp.eq.s32.totalorder %s22, 1
      %p80 = por %p78, %p79
      %p81 = scmp.ne.s32.totalorder %s70, %s71
      %p82 = scmp.eq.s32.totalorder %s22, 0
      %p83 = por %p81, %p82
      %p84 = scmp.ne.s32.totalorder %s70, %s71
      %p85 = scmp.eq.s32.totalorder %s23, 1
      %p86 = por %p84, %p85
      %p88 = scmp.ne.s32.totalorder %s71, %s87
      %p89 = scmp.eq.s32.totalorder %s23, 0
      %p90 = por %p88, %p89
      %s91 = ssub.s32 %s24, %s36
      %s92 = ssub.s32 %s25, %s32
      %s93 = sor.u32 %s91, %s92
      %p94 = scmp.eq.s32.totalorder %s93, 0
      %s96 = sadd.s32 %s95, 1
      %s97 = scalar_select %p94, %s95, %s96
      %p100 = pneg %p94
      %p101 = scmp.eq.s32.totalorder %s17, 1
      %p102 = por %p100, %p101
      %p103 = scmp.ne.s32.totalorder %s95, %s98
      %p104 = scmp.eq.s32.totalorder %s17, 0
      %p105 = por %p103, %p104
      %p106 = scmp.ne.s32.totalorder %s95, %s98
      %p107 = scmp.eq.s32.totalorder %s22, 1
      %p108 = por %p106, %p107
      %p109 = scmp.ne.s32.totalorder %s98, %s99
      %p110 = scmp.eq.s32.totalorder %s22, 0
      %p111 = por %p109, %p110
      %p112 = scmp.ne.s32.totalorder %s98, %s99
      %p113 = scmp.eq.s32.totalorder %s23, 1
      %p114 = por %p112, %p113
      %p116 = scmp.ne.s32.totalorder %s99, %s115
      %p117 = scmp.eq.s32.totalorder %s23, 0
      %p118 = por %p116, %p117
      %s120 = sadd.s32 %s119, 1
      %p123 = scmp.eq.s32.totalorder %s17, 1
      %p124 = scmp.ne.s32.totalorder %s119, %s121
      %p125 = scmp.eq.s32.totalorder %s17, 0
      %p126 = por %p124, %p125
      %p127 = scmp.ne.s32.totalorder %s119, %s121
      %p128 = scmp.eq.s32.totalorder %s22, 1
      %p129 = por %p127, %p128
      %p130 = scmp.ne.s32.totalorder %s121, %s122
      %p131 = scmp.eq.s32.totalorder %s22, 0
      %p132 = por %p130, %p131
      %p133 = scmp.ne.s32.totalorder %s121, %s122
      %p134 = scmp.eq.s32.totalorder %s23, 1
      %p135 = por %p133, %p134
      %p137 = scmp.ne.s32.totalorder %s122, %s136
      %p138 = scmp.eq.s32.totalorder %s23, 0
      %p139 = por %p137, %p138
      %s141 = sadd.s32 %s140, 1
      %p144 = scmp.eq.s32.totalorder %s17, 1
      %p145 = scmp.ne.s32.totalorder %s140, %s142
      %p146 = scmp.eq.s32.totalorder %s17, 0
      %p147 = por %p145, %p146
      %p148 = scmp.ne.s32.totalorder %s140, %s142
      %p149 = scmp.eq.s32.totalorder %s22, 1
      %p150 = por %p148, %p149
      %p151 = scmp.ne.s32.totalorder %s142, %s143
      %p152 = scmp.eq.s32.totalorder %s22, 0
      %p153 = por %p151, %p152
      %p154 = scmp.ne.s32.totalorder %s142, %s143
      %p155 = scmp.eq.s32.totalorder %s23, 1
      %p156 = por %p154, %p155
      %p158 = scmp.ne.s32.totalorder %s143, %s157
      %p159 = scmp.eq.s32.totalorder %s23, 0
      %p160 = por %p158, %p159
      %s161 = ssub.s32 %s24, %s36
      %s162 = ssub.s32 %s25, %s32
      %s163 = sor.u32 %s161, %s162
      %p164 = scmp.eq.s32.totalorder %s163, 0
      %s166 = sadd.s32 %s165, 1
      %s167 = scalar_select %p164, %s165, %s166
      %p170 = pneg %p164
      %p171 = scmp.eq.s32.totalorder %s17, 1
      %p172 = por %p170, %p171
      %p173 = scmp.ne.s32.totalorder %s165, %s168
      %p174 = scmp.eq.s32.totalorder %s17, 0
      %p175 = por %p173, %p174
      %p176 = scmp.ne.s32.totalorder %s165, %s168
      %p177 = scmp.eq.s32.totalorder %s22, 1
      %p178 = por %p176, %p177
      %p179 = scmp.ne.s32.totalorder %s168, %s169
      %p180 = scmp.eq.s32.totalorder %s22, 0
      %p181 = por %p179, %p180
      %p182 = scmp.ne.s32.totalorder %s168, %s169
      %p183 = scmp.eq.s32.totalorder %s23, 1
      %p184 = por %p182, %p183
      %p186 = scmp.ne.s32.totalorder %s169, %s185
      %p187 = scmp.eq.s32.totalorder %s23, 0
      %p188 = por %p186, %p187
      %p189 = scmp.le.s32.totalorder 1, %s17
      %p190 = scmp.lt.s32.totalorder %s17, 3
      %p191 = pnand %p189, %p190
      %p192 = pneg %p191
      // Predicated region
      $region9: #{tpu_custom_call.1} parent=5 // pred_check
        _
      $region10: #{tpu_custom_call.1} parent=5 // pred_check_branch
        %194 = sbr.rel (%p191) target = $region12
      $region11: #{tpu_custom_call.1} parent=5 // pred_region
        %s195 = ssub.s32 %s17, 1
        // Predicated region
        $region13: #{tpu_custom_call.1} parent=11 // pred_check
          %p196 = pneg %p132
        $region14: #{tpu_custom_call.1} parent=11 // pred_check_branch
          %198 = sbr.rel (%p196) target = $region16
        $region15: #{tpu_custom_call.1} parent=11 // pred_region
          _
        $region16: #{tpu_custom_call.1} parent=11 // pred_fallthru
          _
        // Predicated region
        $region17: #{tpu_custom_call.1} parent=11 // pred_check
          %p199 = pneg %p153
        $region18: #{tpu_custom_call.1} parent=11 // pred_check_branch
          %201 = sbr.rel (%p199) target = $region20
        $region19: #{tpu_custom_call.1} parent=11 // pred_region
          _
        $region20: #{tpu_custom_call.1} parent=11 // pred_fallthru
          _
      $region12: #{tpu_custom_call.1} parent=5 // pred_fallthru
        _
      %p202 = scmp.lt.s32.totalorder %s17, 2
      // Predicated region
      $region21: #{tpu_custom_call.1} parent=5 // pred_check
        %p203 = pneg %p202
      $region22: #{tpu_custom_call.1} parent=5 // pred_check_branch
        %205 = sbr.rel (%p203) target = $region24
      $region23: #{tpu_custom_call.1} parent=5 // pred_region
        // Predicated region
        $region25: #{tpu_custom_call.1} parent=23 // pred_check
          %p206 = pneg %p49
        $region26: #{tpu_custom_call.1} parent=23 // pred_check_branch
          %208 = sbr.rel (%p206) target = $region28
        $region27: #{tpu_custom_call.1} parent=23 // pred_region
          %p209 = scmp.lt.s32.totalorder %s24, 1
          %s210 = scalar_select %p209, %s24, 1
          %s211 = smul.addr %s210, 8
          %s212 = scalar_lea.vmem %s0, %s211
        $region28: #{tpu_custom_call.1} parent=23 // pred_fallthru
          _
        // Predicated region
        $region29: #{tpu_custom_call.1} parent=23 // pred_check
          %p213 = pneg %p77
        $region30: #{tpu_custom_call.1} parent=23 // pred_check_branch
          %215 = sbr.rel (%p213) target = $region32
        $region31: #{tpu_custom_call.1} parent=23 // pred_region
          %p216 = scmp.lt.s32.totalorder %s24, 1
          %s217 = scalar_select %p216, %s24, 1
          %p218 = scmp.lt.s32.totalorder %s25, 0
          %s219 = scalar_select %p218, %s25, 0
          %s220 = smul.addr %s217, 4
          %s221 = sadd.s32 %s219, %s220
          %s222 = smul.addr %s221, 4
          %s223 = scalar_lea.vmem %s1, %s222
        $region32: #{tpu_custom_call.1} parent=23 // pred_fallthru
          _
        // Predicated region
        $region33: #{tpu_custom_call.1} parent=23 // pred_check
          %p224 = pneg %p105
        $region34: #{tpu_custom_call.1} parent=23 // pred_check_branch
          %226 = sbr.rel (%p224) target = $region36
        $region35: #{tpu_custom_call.1} parent=23 // pred_region
          %s227 = sand.u32 %s95, 1
          %s228 = scalar_lea.sflag [#allocation3], %s227
          %s229 = sand.u32 %s95, 1
          %s230 = smul.addr %s229, 48
          %s231 = scalar_lea.vmem [#allocation2], %s230
          %233 = vsyncadd %s228, 0
          %s234 = smul.addr %s24, 12
          %s235 = sadd.s32 %s25, %s234
          %s236 = smul.addr %s235, 4
          %s237 = scalar_lea.hbm %s2, %s236
          %s238 = sshll.u32 %s237, 4
          %s239 = int_to_ptr.hbm [resolvable:$true] %s238
          %s240 = sshll.u32 %s231, 4
          %s241 = int_to_ptr.vmem [resolvable:$true] %s240
          %246 = dma.hbm_to_vmem [thread:$0]  %s239, 768, %s241, %s228, 64, 64, 4
        $region36: #{tpu_custom_call.1} parent=23 // pred_fallthru
          _
      $region24: #{tpu_custom_call.1} parent=5 // pred_fallthru
        _
      %p247 = scmp.le.s32.totalorder 1, %s17
      %p248 = scmp.lt.s32.totalorder %s17, 3
      %p249 = pnand %p247, %p248
      %p250 = pneg %p249
      // Predicated region
      $region37: #{tpu_custom_call.1} parent=5 // pred_check
        _
      $region38: #{tpu_custom_call.1} parent=5 // pred_check_branch
        %252 = sbr.rel (%p249) target = $region40
      $region39: #{tpu_custom_call.1} parent=5 // pred_region
        %s253 = ssub.s32 %s17, 1
        %s254 = sand.u32 %s98, 1
        %s255 = scalar_lea.sflag [#allocation3], %s254
        %s256 = sand.u32 %s98, 1
        %s257 = smul.addr %s256, 48
        %s258 = scalar_lea.vmem [#allocation2], %s257
        // Predicated region
        $region41: #{tpu_custom_call.1} parent=39 // pred_check
          %p259 = pneg %p111
        $region42: #{tpu_custom_call.1} parent=39 // pred_check_branch
          %261 = sbr.rel (%p259) target = $region44
        $region43: #{tpu_custom_call.1} parent=39 // pred_region
          %263 = dma.done %s255, 768
        $region44: #{tpu_custom_call.1} parent=39 // pred_fallthru
          _
        %p264 = scmp.lt.s32.totalorder %s26, 1
        %s265 = scalar_select %p264, %s26, 1
        %s266 = smul.addr %s265, 8
        %s267 = scalar_lea.vmem %s0, %s266
        %p268 = pneg %p55
        %p269 = pneg %p52
        %p270 = scmp.lt.s32.totalorder %s26, 1
        %s271 = scalar_select %p270, %s26, 1
        %p272 = scmp.lt.s32.totalorder %s27, 0
        %s273 = scalar_select %p272, %s27, 0
        %s274 = smul.addr %s271, 4
        %s275 = sadd.s32 %s273, %s274
        %s276 = smul.addr %s275, 4
        %s277 = scalar_lea.vmem %s1, %s276
        %p278 = pneg %p83
        %p279 = pneg %p80
        %s280 = sand.u32 %s98, 1
        %s281 = scalar_lea.sflag [#allocation3], %s280
        %s282 = sand.u32 %s98, 1
        %s283 = smul.addr %s282, 48
        %s284 = scalar_lea.vmem [#allocation2], %s283
        %p285 = pneg %p111
        %p286 = pneg %p108
        %p287 = pneg %p132
        %p288 = pneg %p129
        %p289 = pneg %p153
        %p290 = pneg %p150
        %p291 = pneg %p181
        %p292 = pneg %p178
        %s293 = sand.u32 %s168, 1
        %s294 = scalar_lea.sflag [#allocation4], %s293
        %s295 = sand.u32 %s168, 1
        %s296 = smul.addr %s295, 8
        %s297 = scalar_lea.vmem [#allocation5], %s296
        %p298 = scmp.lt.s32.totalorder %s26, 1
        %s299 = scalar_select %p298, %s26, 1
        %s300 = smul.addr %s299, 8
        %s301 = scalar_lea.vmem %s0, %s300
        %p302 = scmp.lt.s32.totalorder %s26, 1
        %s303 = scalar_select %p302, %s26, 1
        %p304 = scmp.lt.s32.totalorder %s27, 0
        %s305 = scalar_select %p304, %s27, 0
        %s306 = smul.addr %s303, 4
        %s307 = sadd.s32 %s305, %s306
        %s308 = smul.addr %s307, 4
        %s309 = scalar_lea.vmem %s1, %s308
        %v311 = vld [vmem:[%s301] sm:$0xff]
        %v312 = vld [vmem:[%s309] sm:$0xf]
        %v313 = vunpack.c.l.bf16 %v312
        %315 = vset.pattern.permute.xlu0 0
        %316 = vperm.xlu0 %315, %v311
        %v317 = vpop.permute.xlu0 %316
        %v319 = vmul.f32 %v317, %v313
        %s320 = scalar_lea.vmem %s309, 4
        %v321 = vld [vmem:[%s320] sm:$0xf]
        %v322 = vunpack.c.l.bf16 %v321
        %v323 = vmul.f32 %v317, %v322
        %s324 = scalar_lea.vmem %s309, 8
        %v325 = vld [vmem:[%s324] sm:$0xf]
        %v326 = vunpack.c.l.bf16 %v325
        %v327 = vmul.f32 %v317, %v326
        %s328 = scalar_lea.vmem %s309, 12
        %v329 = vld [vmem:[%s328] sm:$0xf]
        %v330 = vunpack.c.l.bf16 %v329
        %v331 = vmul.f32 %v317, %v330
        %v332 = vmax.f32 %v319, %v323
        %v333 = vmax.f32 %v327, %v331
        %v334 = vmax.f32 %v332, %v333
        %v335 = vsub.f32 %v319, %v334
        %v336 = vmul.f32 %v335, 1.442695
        %v337 = vpow.pop %v336
        %v338 = vsub.f32 %v323, %v334
        %v339 = vmul.f32 %v338, 1.442695
        %v340 = vpow.pop %v339
        %v341 = vadd.f32 %v337, %v340
        %v342 = vsub.f32 %v327, %v334
        %v343 = vmul.f32 %v342, 1.442695
        %v344 = vpow.pop %v343
        %v345 = vadd.f32 %v341, %v344
        %v346 = vsub.f32 %v331, %v334
        %v347 = vmul.f32 %v346, 1.442695
        %v348 = vpow.pop %v347
        %v349 = vadd.f32 %v345, %v348
        %v350 = vrcp.pop %v349
        %v351 = vld [vmem:[%s3] sm:$0xf]
        %v352 = vld [vmem:[%s258] sm:$0xf]
        %v353 = vld [vmem:[%s258 + $0x4] sm:$0xf]
        %v354 = vld [vmem:[%s258 + $0x8] sm:$0xf]
        %v355 = vld [vmem:[%s4] sm:$0xff]
        %357 = vset.pattern.permute.xlu0 0
        %358 = vperm.xlu0 %357, %v355
        %v359 = vpop.permute.xlu0 %358
        %v364 = vunpack.c.l.b16 %v352
        %v365 = vunpack.c.l.b16 %v353
        %v366 = vunpack.c.l.b16 %v354
        %v367 = vpack.c.b16 %v365, %v364
        %v368 = vpack.c.b16 %v366, %v366
        %vm370 = vcmask 195584
        %v372 = vsel %vm370, %v351, 0
        %vm374 = vcmask 1043456
        %v376 = vsel %vm374, %v368, 0
        %378 = vmatpush.bf16.msra.mxu0 0
        %379 = vmatpush.bf16.msra.mxu0 0
        %380 = vmatpush.bf16.msra.mxu0 0
        %381 = vmatpush.bf16.msra.mxu0 0
        %382 = vmatpush.bf16.msra.mxu0 0
        %383 = vmatpush.bf16.msra.mxu0 0
        %384 = vmatpush.bf16.msra.mxu0 %v376
        %385 = vmatpush.bf16.msra.mxu0 %v367
        %386 = vmatmul.bf16.gmra.mxu0 %v372
        %v387 = vpop.f32.mrf.mxu0
        %v388 = vadd.f32 %v359, %v387
        %v389 = vpop.f32.mrf.mxu0
        %390 = vdwg.mxu0
        %v391 = vmax.f32 %v388, 0.0
        %v392 = vmul.f32 %v337, %v350
        %v393 = vmul.f32 %v391, %v392
        %v394 = vadd.f32 %v393, 0.0
        %s395 = scalar_lea.vmem %s3, 4
        %v396 = vld [vmem:[%s395] sm:$0xf]
        %s397 = scalar_lea.vmem %s258, 12 [#allocation2]
        %v398 = vld [vmem:[%s397] sm:$0xf]
        %v399 = vld [vmem:[%s397 + $0x4] sm:$0xf]
        %v400 = vld [vmem:[%s397 + $0x8] sm:$0xf]
        %s401 = scalar_lea.vmem %s4, 8
        %v402 = vld [vmem:[%s401] sm:$0xff]
        %404 = vset.pattern.permute.xlu0 0
        %405 = vperm.xlu0 %404, %v402
        %v406 = vpop.permute.xlu0 %405
        %v411 = vunpack.c.l.b16 %v398
        %v412 = vunpack.c.l.b16 %v399
        %v413 = vunpack.c.l.b16 %v400
        %v414 = vpack.c.b16 %v412, %v411
        %v415 = vpack.c.b16 %v413, %v413
        %v418 = vsel %vm370, %v396, 0
        %v421 = vsel %vm374, %v415, 0
        %423 = vmatpush.bf16.msra.mxu0 0
        %424 = vmatpush.bf16.msra.mxu0 0
        %425 = vmatpush.bf16.msra.mxu0 0
        %426 = vmatpush.bf16.msra.mxu0 0
        %427 = vmatpush.bf16.msra.mxu0 0
        %428 = vmatpush.bf16.msra.mxu0 0
        %429 = vmatpush.bf16.msra.mxu0 %v421
        %430 = vmatpush.bf16.msra.mxu0 %v414
        %431 = vmatmul.bf16.gmra.mxu0 %v418
        %v432 = vpop.f32.mrf.mxu0
        %v433 = vadd.f32 %v406, %v432
        %v434 = vpop.f32.mrf.mxu0
        %435 = vdwg.mxu0
        %v436 = vmax.f32 %v433, 0.0
        %v437 = vmul.f32 %v340, %v350
        %v438 = vmul.f32 %v436, %v437
        %v439 = vadd.f32 %v394, %v438
        %s440 = scalar_lea.vmem %s3, 8
        %v441 = vld [vmem:[%s440] sm:$0xf]
        %s442 = scalar_lea.vmem %s258, 24 [#allocation2]
        %v443 = vld [vmem:[%s442] sm:$0xf]
        %v444 = vld [vmem:[%s442 + $0x4] sm:$0xf]
        %v445 = vld [vmem:[%s442 + $0x8] sm:$0xf]
        %s446 = scalar_lea.vmem %s4, 16
        %v447 = vld [vmem:[%s446] sm:$0xff]
        %449 = vset.pattern.permute.xlu0 0
        %450 = vperm.xlu0 %449, %v447
        %v451 = vpop.permute.xlu0 %450
        %v456 = vunpack.c.l.b16 %v443
        %v457 = vunpack.c.l.b16 %v444
        %v458 = vunpack.c.l.b16 %v445
        %v459 = vpack.c.b16 %v457, %v456
        %v460 = vpack.c.b16 %v458, %v458
        %v463 = vsel %vm370, %v441, 0
        %v466 = vsel %vm374, %v460, 0
        %468 = vmatpush.bf16.msra.mxu0 0
        %469 = vmatpush.bf16.msra.mxu0 0
        %470 = vmatpush.bf16.msra.mxu0 0
        %471 = vmatpush.bf16.msra.mxu0 0
        %472 = vmatpush.bf16.msra.mxu0 0
        %473 = vmatpush.bf16.msra.mxu0 0
        %474 = vmatpush.bf16.msra.mxu0 %v466
        %475 = vmatpush.bf16.msra.mxu0 %v459
        %476 = vmatmul.bf16.gmra.mxu0 %v463
        %v477 = vpop.f32.mrf.mxu0
        %v478 = vadd.f32 %v451, %v477
        %v479 = vpop.f32.mrf.mxu0
        %480 = vdwg.mxu0
        %v481 = vmax.f32 %v478, 0.0
        %v482 = vmul.f32 %v344, %v350
        %v483 = vmul.f32 %v481, %v482
        %v484 = vadd.f32 %v439, %v483
        %s485 = scalar_lea.vmem %s3, 12
        %v486 = vld [vmem:[%s485] sm:$0xf]
        %s487 = scalar_lea.vmem %s258, 36 [#allocation2]
        %v488 = vld [vmem:[%s487] sm:$0xf]
        %v489 = vld [vmem:[%s487 + $0x4] sm:$0xf]
        %v490 = vld [vmem:[%s487 + $0x8] sm:$0xf]
        %s491 = scalar_lea.vmem %s4, 24
        %v492 = vld [vmem:[%s491] sm:$0xff]
        %494 = vset.pattern.permute.xlu0 0
        %495 = vperm.xlu0 %494, %v492
        %v496 = vpop.permute.xlu0 %495
        %v501 = vunpack.c.l.b16 %v488
        %v502 = vunpack.c.l.b16 %v489
        %v503 = vunpack.c.l.b16 %v490
        %v504 = vpack.c.b16 %v502, %v501
        %v505 = vpack.c.b16 %v503, %v503
        %v508 = vsel %vm370, %v486, 0
        %v511 = vsel %vm374, %v505, 0
        %513 = vmatpush.bf16.msra.mxu0 0
        %514 = vmatpush.bf16.msra.mxu0 0
        %515 = vmatpush.bf16.msra.mxu0 0
        %516 = vmatpush.bf16.msra.mxu0 0
        %517 = vmatpush.bf16.msra.mxu0 0
        %518 = vmatpush.bf16.msra.mxu0 0
        %519 = vmatpush.bf16.msra.mxu0 %v511
        %520 = vmatpush.bf16.msra.mxu0 %v504
        %521 = vmatmul.bf16.gmra.mxu0 %v508
        %v522 = vpop.f32.mrf.mxu0
        %v523 = vadd.f32 %v496, %v522
        %v524 = vpop.f32.mrf.mxu0
        %525 = vdwg.mxu0
        %v526 = vmax.f32 %v523, 0.0
        %v527 = vmul.f32 %v348, %v350
        %v528 = vmul.f32 %v526, %v527
        %v529 = vadd.f32 %v484, %v528
        %530 = vst [vmem:[%s297] sm:$0xff] %v529
        %s531 = sand.u32 %s168, 1
        %s532 = scalar_lea.sflag [#allocation4], %s531
        %s533 = sand.u32 %s168, 1
        %s534 = smul.addr %s533, 8
        %s535 = scalar_lea.vmem [#allocation5], %s534
        // Predicated region
        $region45: #{tpu_custom_call.1} parent=39 // pred_check
          %p536 = pneg %p178
        $region46: #{tpu_custom_call.1} parent=39 // pred_check_branch
          %538 = sbr.rel (%p536) target = $region48
        $region47: #{tpu_custom_call.1} parent=39 // pred_region
          %540 = vsyncadd %s532, 0
          %s541 = sadd.s32 %s27, %s26
          %s542 = smul.addr %s541, 8
          %s543 = scalar_lea.hbm %s5, %s542
          %s545 = sshll.u32 %s535, 4
          %s546 = int_to_ptr.vmem [resolvable:$true] %s545
          %s547 = sshll.u32 %s543, 4
          %s548 = int_to_ptr.hbm [resolvable:$true] %s547
          %550 = dma.vmem_to_hbm [thread:$0]  %s546, 128, %s548, %s532
        $region48: #{tpu_custom_call.1} parent=39 // pred_fallthru
          _
      $region40: #{tpu_custom_call.1} parent=5 // pred_fallthru
        _
      %p551 = scmp.le.s32.totalorder 2, %s17
      // Predicated region
      $region49: #{tpu_custom_call.1} parent=5 // pred_check
        %p552 = pneg %p551
      $region50: #{tpu_custom_call.1} parent=5 // pred_check_branch
        %554 = sbr.rel (%p552) target = $region52
      $region51: #{tpu_custom_call.1} parent=5 // pred_region
        %s555 = ssub.s32 %s17, 2
        // Predicated region
        $region53: #{tpu_custom_call.1} parent=51 // pred_check
          %p556 = pneg %p184
        $region54: #{tpu_custom_call.1} parent=51 // pred_check_branch
          %558 = sbr.rel (%p556) target = $region56
        $region55: #{tpu_custom_call.1} parent=51 // pred_region
          %s559 = sand.u32 %s169, 1
          %s560 = scalar_lea.sflag [#allocation4], %s559
          %s561 = sand.u32 %s169, 1
          %s562 = smul.addr %s561, 8
          %s563 = scalar_lea.vmem [#allocation5], %s562
          %565 = dma.done %s560, 128
        $region56: #{tpu_custom_call.1} parent=51 // pred_fallthru
          _
      $region52: #{tpu_custom_call.1} parent=5 // pred_fallthru
        _
    $region6: #{tpu_custom_call.1} parent=1 // loop_footer
      %s21 = sadd.s32 1, %s17
    $region7: #{tpu_custom_call.1} parent=1 // loop_footer_branch
      %16 = sbr.rel target = $region3
    $region8: #{tpu_custom_call.1} parent=1 // loop_exit
      _
    %566 = vsyncpa [#allocation3], 1
    %s567 = scalar_lea.sflag [#allocation3], 1
    %568 = vsyncpa %s567, 1
    %569 = vsyncpa [#allocation4], 1
    %s570 = scalar_lea.sflag [#allocation4], 1
    %571 = vsyncpa %s570, 1

</llo_original>
